<compile_context>
chip_gen: v6e
topology: v6e:2x2x1
jax: 0.10.0
libtpu: 0.0.40
codegen_flags: <defaults>
</compile_context>

<pallas_src>
import functools

import jax
import jax.numpy as jnp
from jax import lax
from jax.experimental import pallas as pl
from jax.experimental.pallas import tpu as pltpu

IGNORE_INDEX = 255
LB_SMOOTH = 0.1      # LabelSmoothSoftmaxCE default
GD_EPS = 1e-6        # GeneralizedDiceLoss default

_CR = 8              # compute-chunk rows (one vreg sublane group)
_LANES = 128


def _round_up(x, m):
    return -(-x // m) * m


def _loss_kernel(scal_ref, logits_ref, labels_ref,
                 tsum_ref, psum_ref, isum_ref, lsce_ref, nval_ref,
                 *, num_classes, lb_smooth, ignore_index, num_pix,
                 block_rows, needs_mask):
    i = pl.program_id(1)                 # pixel-tile index (reduction axis)
    C = num_classes

    @pl.when(i == 0)
    def _():
        tsum_ref[...] = jnp.zeros_like(tsum_ref)
        psum_ref[...] = jnp.zeros_like(psum_ref)
        isum_ref[...] = jnp.zeros_like(isum_ref)
        lsce_ref[...] = jnp.zeros_like(lsce_ref)
        nval_ref[...] = jnp.zeros_like(nval_ref)

    tmin = scal_ref[0]                   # target.min()
    do_remap = scal_ref[1]               # GDL: remap ignore -> tmin?
    lb_pos = 1.0 - lb_smooth
    lb_neg = lb_smooth / C

    def chunk(c):
        base = c * _CR
        if not isinstance(base, int):
            base = pl.multiple_of(base, _CR)
        lg = logits_ref[:, pl.ds(base, _CR), :].astype(jnp.float32)   # (C, 8, 128)
        lab = labels_ref[pl.ds(base, _CR), :]                         # (8, 128) int32

        if needs_mask:
            row = lax.broadcasted_iota(jnp.int32, (_CR, _LANES), 0)
            lane = lax.broadcasted_iota(jnp.int32, (_CR, _LANES), 1)
            gpix = (i * block_rows + base + row) * _LANES + lane
            valid = gpix < num_pix                                    # (8, 128)
            # Ragged / padded regions can hold undefined data: use selects
            # (never multiplies) and zero the logits before exp.
            lg = jnp.where(valid[None], lg, 0.0)

        ignore = lab == ignore_index                                  # (8, 128)
        gdl_lab = jnp.where(jnp.logical_and(ignore, do_remap != 0), tmin, lab)
        if needs_mask:
            gdl_lab = jnp.where(valid, gdl_lab, -1)
            lsce_mask = jnp.logical_and(jnp.logical_not(ignore), valid)
        else:
            lsce_mask = jnp.logical_not(ignore)

        # bool one-hot (kept as a mask; float cast only where required)
        cls = lax.broadcasted_iota(jnp.int32, (C, _CR, _LANES), 0)
        match = cls == gdl_lab[None]                                  # (C, 8, 128)

        # softmax / log-softmax pieces over the class (leading) axis
        m = jnp.max(lg, axis=0, keepdims=True)                        # (1, 8, 128)
        z = lg - m
        ez = jnp.exp(z)
        sez = jnp.sum(ez, axis=0, keepdims=True)
        log_sez = jnp.log(sez)
        inv_sez = pl.reciprocal(sez)                                  # exact
        if needs_mask:
            inv_sez = jnp.where(valid[None], inv_sez, 0.0)
        sm = ez * inv_sez                                             # softmax, 0 on invalid

        # ---- LabelSmoothSoftmaxCE (decomposed; no smoothed-label tensor) ----
        #   sum_c logsm  = sum_c z - C * log_sez
        #   picked logsm = z[label] - log_sez
        sum_z = jnp.sum(z, axis=0, keepdims=True)
        picked_z = jnp.sum(jnp.where(match, z, 0.0), axis=0, keepdims=True)
        sum_logsm = sum_z - C * log_sez
        picked_logsm = picked_z - log_sez
        per_pix = -(lb_neg * sum_logsm + (lb_pos - lb_neg) * picked_logsm)
        per_pix = jnp.where(lsce_mask[None], per_pix, 0.0)

        lsce_ref[...] += per_pix[0]                                   # (8, 128)
        nval_ref[...] += lsce_mask.astype(jnp.float32)

        # ---- Generalized Dice partial sums (lane-dense per-class slabs) ----
        tsum_ref[...] += match.astype(jnp.float32)                    # target / class
        psum_ref[...] += sm                                           # softmax / class
        isum_ref[...] += jnp.where(match, sm, 0.0)                    # intersection

    n_chunks = block_rows // _CR
    if n_chunks == 1:
        chunk(0)
    else:
        @pl.loop(0, n_chunks, unroll=(n_chunks <= 8))
        def _(c):
            chunk(c)


def _vmem_budget_bytes():
    try:
        cap = int(pltpu.get_tpu_info().vmem_capacity_bytes)
    except Exception:
        cap = 64 << 20          # conservative fallback (v7x-sized)
    return min(cap * 3 // 4, 100 << 20)


def _choose_block_rows(rows, C, itemsize, vmem_budget):
    acc = (3 * C + 2) * _CR * _LANES * 4              # resident output accumulators
    temps = 14 * (C + 2) * _CR * _LANES * 4           # generous chunk-temporary estimate
    per_row = 2 * _LANES * (C * itemsize + 4)         # double-buffered logits + labels
    avail = vmem_budget - acc - temps - (2 << 20)
    r = max(_CR, avail // per_row)
    r = (r // _CR) * _CR
    r = int(min(r, 2048))
    if r >= rows:
        r = rows
    return max(r, _CR)


def lsce_gd_loss(logits, labels, *, max_rows_per_tile=None):
    """logits: (N, C, H, W) float (f32 or bf16); labels: (N, H, W) int. Scalar loss."""
    N, C, H, W = logits.shape
    HW = H * W
    HWp = _round_up(HW, _CR * _LANES)                 # pixel axis -> multiple of 1024
    rows = HWp // _LANES

    lg = logits.reshape(N, C, HW)
    lb = labels.reshape(N, HW).astype(jnp.int32)
    if HWp != HW:
        # TODO(synk): copies logits once; only triggers when H*W is not a
        # multiple of 1024 (needed for the free (rows, 128) pixel-major view).
        lg = jnp.pad(lg, ((0, 0), (0, 0), (0, HWp - HW)))
        lb = jnp.pad(lb, ((0, 0), (0, HWp - HW)), constant_values=IGNORE_INDEX)
    lg = lg.reshape(N, C, rows, _LANES)
    lb = lb.reshape(N, rows, _LANES)

    # GDL ignore-index remap decision (scalar label preprocessing, glue)
    tmin = jnp.min(labels).astype(jnp.int32)
    tmax = jnp.max(labels).astype(jnp.int32)
    in_range = jnp.logical_and(tmin <= IGNORE_INDEX, IGNORE_INDEX < tmax)
    has_ign = jnp.any(labels == IGNORE_INDEX)
    do_remap = jnp.logical_and(jnp.logical_not(in_range), has_ign).astype(jnp.int32)
    scal = jnp.stack([tmin, do_remap]).astype(jnp.int32)

    vmem_budget = _vmem_budget_bytes()
    itemsize = jnp.dtype(lg.dtype).itemsize
    R = _choose_block_rows(rows, C, itemsize, vmem_budget)
    if max_rows_per_tile is not None:
        R = min(R, max(_CR, (max_rows_per_tile // _CR) * _CR))
        R = min(R, rows)
    num_tiles = pl.cdiv(rows, R)
    needs_mask = (HWp != HW) or (rows % R != 0)

    kernel = functools.partial(
        _loss_kernel, num_classes=C, lb_smooth=LB_SMOOTH,
        ignore_index=IGNORE_INDEX, num_pix=HW, block_rows=R,
        needs_mask=needs_mask)

    f32 = jnp.float32
    out_shape = (
        jax.ShapeDtypeStruct((N, C, _CR, _LANES), f32),   # per-class target sum slab
        jax.ShapeDtypeStruct((N, C, _CR, _LANES), f32),   # per-class softmax sum slab
        jax.ShapeDtypeStruct((N, C, _CR, _LANES), f32),   # per-class intersection slab
        jax.ShapeDtypeStruct((N, _CR, _LANES), f32),      # LSCE loss sum slab
        jax.ShapeDtypeStruct((N, _CR, _LANES), f32),      # n_valid slab
    )
    grid_spec = pltpu.PrefetchScalarGridSpec(
        num_scalar_prefetch=1,
        grid=(N, num_tiles),
        in_specs=[
            pl.BlockSpec((None, C, R, _LANES), lambda n, i, s: (n, 0, i, 0)),
            pl.BlockSpec((None, R, _LANES), lambda n, i, s: (n, i, 0)),
        ],
        out_specs=[
            pl.BlockSpec((None, C, _CR, _LANES), lambda n, i, s: (n, 0, 0, 0)),
            pl.BlockSpec((None, C, _CR, _LANES), lambda n, i, s: (n, 0, 0, 0)),
            pl.BlockSpec((None, C, _CR, _LANES), lambda n, i, s: (n, 0, 0, 0)),
            pl.BlockSpec((None, _CR, _LANES), lambda n, i, s: (n, 0, 0)),
            pl.BlockSpec((None, _CR, _LANES), lambda n, i, s: (n, 0, 0)),
        ],
    )

    tsum, psum, isum, lsce_s, nval = pl.pallas_call(
        kernel,
        out_shape=out_shape,
        grid_spec=grid_spec,
        compiler_params=pltpu.CompilerParams(
            dimension_semantics=("parallel", "arbitrary"),
            vmem_limit_bytes=int(vmem_budget)),
    )(scal, lg, lb)

    # ---- tiny scalar epilogue (glue) ----
    lsce = jnp.sum(lsce_s) / jnp.sum(nval)

    t = jnp.sum(tsum, axis=(0, 2, 3))
    p = jnp.sum(psum, axis=(0, 2, 3))
    s = jnp.sum(isum, axis=(0, 2, 3))
    w_l = 1.0 / jnp.maximum(t * t, GD_EPS)
    intersect = jnp.sum(s * w_l)
    denom = jnp.sum(jnp.maximum((p + t) * w_l, GD_EPS))
    gdice = 1.0 - 2.0 * (intersect / denom)

    return 0.3923 * lsce + 0.3923 * gdice


def _ref_loss(logits, labels):
    """Pure-JAX reference mirroring the PyTorch forward (minus HDLoss)."""
    N, C, H, W = logits.shape
    ignore = labels == IGNORE_INDEX
    n_valid = jnp.sum(jnp.logical_not(ignore)).astype(jnp.float32)
    lab0 = jnp.where(ignore, 0, labels)
    lb_pos, lb_neg = 1.0 - LB_SMOOTH, LB_SMOOTH / C
    oh = jax.nn.one_hot(lab0, C, axis=1)
    smooth = lb_neg + (lb_pos - lb_neg) * oh
    logs = jax.nn.log_softmax(logits, axis=1)
    loss = -jnp.sum(logs * smooth, axis=1)
    loss = jnp.where(ignore, 0.0, loss)
    lsce = loss.sum() / n_valid

    tmin = labels.min()
    tmax = labels.max()
    in_range = jnp.logical_and(tmin <= IGNORE_INDEX, IGNORE_INDEX < tmax)
    remap = jnp.logical_and(jnp.logical_not(in_range), jnp.any(ignore))
    gdl_lab = jnp.where(jnp.logical_and(ignore, remap), tmin, labels)
    oh_g = jax.nn.one_hot(gdl_lab, C, axis=1)
    sm = jax.nn.softmax(logits, axis=1)
    pred = jnp.transpose(sm, (1, 0, 2, 3)).reshape(C, -1)
    tgt = jnp.transpose(oh_g, (1, 0, 2, 3)).reshape(C, -1)
    t = tgt.sum(-1)
    w_l = 1.0 / jnp.maximum(t * t, GD_EPS)
    intersect = jnp.sum((pred * tgt).sum(-1) * w_l)
    denom = jnp.sum(jnp.maximum((pred + tgt).sum(-1) * w_l, GD_EPS))
    gdice = 1.0 - 2.0 * (intersect / denom)
    return 0.3923 * lsce + 0.3923 * gdice


if __name__ == "__main__":
    key = jax.random.PRNGKey(0)

    def run_case(N, C, H, W, k, max_rows=None):
        k1, k2, k3 = jax.random.split(k, 3)
        logits = jax.random.normal(k1, (N, C, H, W), dtype=jnp.float32)
        labels = jax.random.randint(k2, (N, H, W), 0, C, dtype=jnp.int32)
        # sprinkle a few ignore_index pixels to exercise the ignore paths
        ign_mask = jax.random.uniform(k3, (N, H, W)) < 0.1
        labels = jnp.where(ign_mask, IGNORE_INDEX, labels)

        fn = jax.jit(functools.partial(lsce_gd_loss, max_rows_per_tile=max_rows))
        loss = jax.block_until_ready(fn(logits, labels))
        ref = _ref_loss(logits, labels)
        assert jnp.allclose(loss, ref, atol=5e-5, rtol=5e-5), (
            float(loss), float(ref), (N, C, H, W))

    ks = jax.random.split(key, 3)
    run_case(2, 4, 16, 16, ks[0])                 # HW=256: alignment pad + mask path
    run_case(2, 4, 15, 15, ks[1])                 # HW=225: lane-pad + mask path
    run_case(2, 5, 64, 64, ks[2], max_rows=24)    # rows=32, R=24: ragged last grid block
    print("KERNEL_OK")
</pallas_src>

<mosaic_0001>
module attributes {stable_mosaic.version = 11 : i64} {
  func.func @_loss_kernel(%arg0: i32, %arg1: i32, %arg2: memref<2xi32, #tpu.memory_space<smem>>, %arg3: memref<1x4x8x128xf32, #tpu.memory_space<vmem>>, %arg4: memref<1x8x128xi32, #tpu.memory_space<vmem>>, %arg5: memref<1x4x8x128xf32, #tpu.memory_space<vmem>>, %arg6: memref<1x4x8x128xf32, #tpu.memory_space<vmem>>, %arg7: memref<1x4x8x128xf32, #tpu.memory_space<vmem>>, %arg8: memref<1x8x128xf32, #tpu.memory_space<vmem>>, %arg9: memref<1x8x128xf32, #tpu.memory_space<vmem>>) attributes {dimension_semantics = [#tpu.dimension_semantics<parallel>, #tpu.dimension_semantics<arbitrary>], iteration_bounds = array<i64: 2, 1>, scalar_prefetch = 1 : i64, scratch_operands = 0 : i64, tpu.core_type = #tpu.core_type<tc>, window_params = [{transform_indices = @transform_0, window_bounds = array<i64: 1, 4, 8, 128>}, {transform_indices = @transform_1, window_bounds = array<i64: 1, 8, 128>}, {transform_indices = @transform_2, window_bounds = array<i64: 1, 4, 8, 128>}, {transform_indices = @transform_3, window_bounds = array<i64: 1, 4, 8, 128>}, {transform_indices = @transform_4, window_bounds = array<i64: 1, 4, 8, 128>}, {transform_indices = @transform_5, window_bounds = array<i64: 1, 8, 128>}, {transform_indices = @transform_6, window_bounds = array<i64: 1, 8, 128>}]} {
    %c0_i32 = arith.constant 0 : i32
    %0 = arith.cmpi eq, %arg1, %c0_i32 : i32
    %1 = arith.extui %0 : i1 to i32
    %c0_i32_0 = arith.constant 0 : i32
    %2 = arith.cmpi ne, %1, %c0_i32_0 : i32
    scf.if %2 {
      %cst_59 = arith.constant 0.000000e+00 : f32
      %111 = vector.broadcast %cst_59 : f32 to vector<4x8x128xf32>
      %c0_60 = arith.constant 0 : index
      %c0_61 = arith.constant 0 : index
      %c0_62 = arith.constant 0 : index
      %c0_63 = arith.constant 0 : index
      %112 = vector.load %arg5[%c0_60, %c0_61, %c0_62, %c0_63] : memref<1x4x8x128xf32, #tpu.memory_space<vmem>>, vector<1x4x8x128xf32>
      %113 = vector.shape_cast %112 : vector<1x4x8x128xf32> to vector<4x8x128xf32>
      %114 = vector.shape_cast %111 : vector<4x8x128xf32> to vector<1x4x8x128xf32>
      tpu.vector_store %arg5[%c0_60, %c0_61, %c0_62, %c0_63], %114 {strides = array<i32>} : memref<1x4x8x128xf32, #tpu.memory_space<vmem>>, vector<1x4x8x128xf32>,
      %cst_64 = arith.constant 0.000000e+00 : f32
      %115 = vector.broadcast %cst_64 : f32 to vector<4x8x128xf32>
      %c0_65 = arith.constant 0 : index
      %c0_66 = arith.constant 0 : index
      %c0_67 = arith.constant 0 : index
      %c0_68 = arith.constant 0 : index
      %116 = vector.load %arg6[%c0_65, %c0_66, %c0_67, %c0_68] : memref<1x4x8x128xf32, #tpu.memory_space<vmem>>, vector<1x4x8x128xf32>
      %117 = vector.shape_cast %116 : vector<1x4x8x128xf32> to vector<4x8x128xf32>
      %118 = vector.shape_cast %115 : vector<4x8x128xf32> to vector<1x4x8x128xf32>
      tpu.vector_store %arg6[%c0_65, %c0_66, %c0_67, %c0_68], %118 {strides = array<i32>} : memref<1x4x8x128xf32, #tpu.memory_space<vmem>>, vector<1x4x8x128xf32>,
      %cst_69 = arith.constant 0.000000e+00 : f32
      %119 = vector.broadcast %cst_69 : f32 to vector<4x8x128xf32>
      %c0_70 = arith.constant 0 : index
      %c0_71 = arith.constant 0 : index
      %c0_72 = arith.constant 0 : index
      %c0_73 = arith.constant 0 : index
      %120 = vector.load %arg7[%c0_70, %c0_71, %c0_72, %c0_73] : memref<1x4x8x128xf32, #tpu.memory_space<vmem>>, vector<1x4x8x128xf32>
      %121 = vector.shape_cast %120 : vector<1x4x8x128xf32> to vector<4x8x128xf32>
      %122 = vector.shape_cast %119 : vector<4x8x128xf32> to vector<1x4x8x128xf32>
      tpu.vector_store %arg7[%c0_70, %c0_71, %c0_72, %c0_73], %122 {strides = array<i32>} : memref<1x4x8x128xf32, #tpu.memory_space<vmem>>, vector<1x4x8x128xf32>,
      %cst_74 = arith.constant 0.000000e+00 : f32
      %123 = vector.broadcast %cst_74 : f32 to vector<8x128xf32>
      %c0_75 = arith.constant 0 : index
      %c0_76 = arith.constant 0 : index
      %c0_77 = arith.constant 0 : index
      %124 = vector.load %arg8[%c0_75, %c0_76, %c0_77] : memref<1x8x128xf32, #tpu.memory_space<vmem>>, vector<1x8x128xf32>
      %125 = vector.shape_cast %124 : vector<1x8x128xf32> to vector<8x128xf32>
      %126 = vector.shape_cast %123 : vector<8x128xf32> to vector<1x8x128xf32>
      tpu.vector_store %arg8[%c0_75, %c0_76, %c0_77], %126 {strides = array<i32>} : memref<1x8x128xf32, #tpu.memory_space<vmem>>, vector<1x8x128xf32>,
      %cst_78 = arith.constant 0.000000e+00 : f32
      %127 = vector.broadcast %cst_78 : f32 to vector<8x128xf32>
      %c0_79 = arith.constant 0 : index
      %c0_80 = arith.constant 0 : index
      %c0_81 = arith.constant 0 : index
      %128 = vector.load %arg9[%c0_79, %c0_80, %c0_81] : memref<1x8x128xf32, #tpu.memory_space<vmem>>, vector<1x8x128xf32>
      %129 = vector.shape_cast %128 : vector<1x8x128xf32> to vector<8x128xf32>
      %130 = vector.shape_cast %127 : vector<8x128xf32> to vector<1x8x128xf32>
      tpu.vector_store %arg9[%c0_79, %c0_80, %c0_81], %130 {strides = array<i32>} : memref<1x8x128xf32, #tpu.memory_space<vmem>>, vector<1x8x128xf32>,
    } else {
    }
    %c0 = arith.constant 0 : index
    %3 = memref.load %arg2[%c0] : memref<2xi32, #tpu.memory_space<smem>>
    %c1 = arith.constant 1 : index
    %4 = memref.load %arg2[%c1] : memref<2xi32, #tpu.memory_space<smem>>
    %c0_1 = arith.constant 0 : index
    %c0_2 = arith.constant 0 : index
    %c0_3 = arith.constant 0 : index
    %c0_4 = arith.constant 0 : index
    %5 = vector.load %arg3[%c0_1, %c0_2, %c0_3, %c0_4] : memref<1x4x8x128xf32, #tpu.memory_space<vmem>>, vector<1x4x8x128xf32>
    %6 = vector.shape_cast %5 : vector<1x4x8x128xf32> to vector<4x8x128xf32>
    %c0_5 = arith.constant 0 : index
    %c0_6 = arith.constant 0 : index
    %c0_7 = arith.constant 0 : index
    %7 = vector.load %arg4[%c0_5, %c0_6, %c0_7] : memref<1x8x128xi32, #tpu.memory_space<vmem>>, vector<1x8x128xi32>
    %8 = vector.shape_cast %7 : vector<1x8x128xi32> to vector<8x128xi32>
    %9 = tpu.iota {dimensions = array<i32: 0>} : vector<8x128xi32>
    %10 = tpu.iota {dimensions = array<i32: 1>} : vector<8x128xi32>
    %c8_i32 = arith.constant 8 : i32
    %11 = arith.muli %arg1, %c8_i32 : i32
    %c0_i32_8 = arith.constant 0 : i32
    %12 = arith.addi %11, %c0_i32_8 : i32
    %13 = vector.broadcast %12 : i32 to vector<8x128xi32>
    %14 = arith.addi %13, %9 : vector<8x128xi32>
    %c128_i32 = arith.constant 128 : i32
    %15 = vector.broadcast %c128_i32 : i32 to vector<8x128xi32>
    %16 = arith.muli %14, %15 : vector<8x128xi32>
    %17 = arith.addi %16, %10 : vector<8x128xi32>
    %c256_i32 = arith.constant 256 : i32
    %18 = vector.broadcast %c256_i32 : i32 to vector<8x128xi32>
    %19 = arith.cmpi slt, %17, %18 : vector<8x128xi32>
    %20 = vector.shape_cast %19 : vector<8x128xi1> to vector<1x8x128xi1>
    %cst = arith.constant 0.000000e+00 : f32
    %21 = vector.shape_cast %20 : vector<1x8x128xi1> to vector<1x8x128xi1>
    %22 = vector.broadcast %21 : vector<1x8x128xi1> to vector<4x8x128xi1>
    %23 = vector.broadcast %cst : f32 to vector<4x8x128xf32>
    %24 = arith.select %22, %6, %23 : vector<4x8x128xi1>, vector<4x8x128xf32>
    %c255_i32 = arith.constant 255 : i32
    %25 = vector.broadcast %c255_i32 : i32 to vector<8x128xi32>
    %26 = arith.cmpi eq, %8, %25 : vector<8x128xi32>
    %c0_i32_9 = arith.constant 0 : i32
    %27 = arith.cmpi ne, %4, %c0_i32_9 : i32
    %28 = vector.broadcast %27 : i1 to vector<8x128xi1>
    %29 = arith.andi %26, %28 : vector<8x128xi1>
    %30 = vector.broadcast %3 : i32 to vector<8x128xi32>
    %31 = arith.select %29, %30, %8 : vector<8x128xi1>, vector<8x128xi32>
    %c-1_i32 = arith.constant -1 : i32
    %32 = vector.broadcast %c-1_i32 : i32 to vector<8x128xi32>
    %33 = arith.select %19, %31, %32 : vector<8x128xi1>, vector<8x128xi32>
    %cst_10 = arith.constant dense<true> : vector<8x128xi1>
    %34 = arith.xori %26, %cst_10 : vector<8x128xi1>
    %35 = arith.andi %34, %19 : vector<8x128xi1>
    %36 = tpu.iota {dimensions = array<i32: 0>} : vector<4x8x128xi32>
    %37 = vector.shape_cast %33 : vector<8x128xi32> to vector<1x8x128xi32>
    %38 = vector.broadcast %37 : vector<1x8x128xi32> to vector<4x8x128xi32>
    %39 = arith.cmpi eq, %36, %38 : vector<4x8x128xi32>
    %cst_11 = arith.constant dense<0xFF800000> : vector<8x128xf32>
    %40 = vector.multi_reduction <maximumf>, %24, %cst_11 [0] : vector<4x8x128xf32> to vector<8x128xf32>
    %41 = vector.shape_cast %40 : vector<8x128xf32> to vector<1x8x128xf32>
    %42 = vector.broadcast %41 : vector<1x8x128xf32> to vector<4x8x128xf32>
    %43 = arith.subf %24, %42 : vector<4x8x128xf32>
    %44 = math.exp %43 : vector<4x8x128xf32>
    %cst_12 = arith.constant dense<0.000000e+00> : vector<8x128xf32>
    %45 = vector.multi_reduction <add>, %44, %cst_12 [0] : vector<4x8x128xf32> to vector<8x128xf32>
    %46 = vector.shape_cast %45 : vector<8x128xf32> to vector<1x8x128xf32>
    %47 = math.log %46 : vector<1x8x128xf32>
    %48 = tpu.reciprocal %46 : vector<1x8x128xf32> -> vector<1x8x128xf32>
    %49 = vector.shape_cast %19 : vector<8x128xi1> to vector<1x8x128xi1>
    %cst_13 = arith.constant 0.000000e+00 : f32
    %50 = vector.broadcast %cst_13 : f32 to vector<1x8x128xf32>
    %51 = arith.select %49, %48, %50 : vector<1x8x128xi1>, vector<1x8x128xf32>
    %52 = vector.broadcast %51 : vector<1x8x128xf32> to vector<4x8x128xf32>
    %53 = arith.mulf %44, %52 : vector<4x8x128xf32>
    %cst_14 = arith.constant dense<0.000000e+00> : vector<8x128xf32>
    %54 = vector.multi_reduction <add>, %43, %cst_14 [0] : vector<4x8x128xf32> to vector<8x128xf32>
    %55 = vector.shape_cast %54 : vector<8x128xf32> to vector<1x8x128xf32>
    %cst_15 = arith.constant 0.000000e+00 : f32
    %56 = vector.broadcast %cst_15 : f32 to vector<4x8x128xf32>
    %57 = arith.select %39, %43, %56 : vector<4x8x128xi1>, vector<4x8x128xf32>
    %cst_16 = arith.constant dense<0.000000e+00> : vector<8x128xf32>
    %58 = vector.multi_reduction <add>, %57, %cst_16 [0] : vector<4x8x128xf32> to vector<8x128xf32>
    %59 = vector.shape_cast %58 : vector<8x128xf32> to vector<1x8x128xf32>
    %cst_17 = arith.constant 4.000000e+00 : f32
    %60 = vector.broadcast %cst_17 : f32 to vector<1x8x128xf32>
    %61 = arith.mulf %60, %47 : vector<1x8x128xf32>
    %62 = arith.subf %55, %61 : vector<1x8x128xf32>
    %63 = arith.subf %59, %47 : vector<1x8x128xf32>
    %cst_18 = arith.constant 2.500000e-02 : f32
    %64 = vector.broadcast %cst_18 : f32 to vector<1x8x128xf32>
    %65 = arith.mulf %64, %62 : vector<1x8x128xf32>
    %cst_19 = arith.constant 8.750000e-01 : f32
    %66 = vector.broadcast %cst_19 : f32 to vector<1x8x128xf32>
    %67 = arith.mulf %66, %63 : vector<1x8x128xf32>
    %68 = arith.addf %65, %67 : vector<1x8x128xf32>
    %cst_20 = arith.constant 0.000000e+00 : f32
    %69 = vector.broadcast %cst_20 : f32 to vector<1x8x128xf32>
    %70 = arith.subf %69, %68 : vector<1x8x128xf32>
    %71 = vector.shape_cast %35 : vector<8x128xi1> to vector<1x8x128xi1>
    %cst_21 = arith.constant 0.000000e+00 : f32
    %72 = vector.broadcast %cst_21 : f32 to vector<1x8x128xf32>
    %73 = arith.select %71, %70, %72 : vector<1x8x128xi1>, vector<1x8x128xf32>
    %c0_22 = arith.constant 0 : index
    %c0_23 = arith.constant 0 : index
    %c0_24 = arith.constant 0 : index
    %74 = vector.load %arg8[%c0_22, %c0_23, %c0_24] : memref<1x8x128xf32, #tpu.memory_space<vmem>>, vector<1x8x128xf32>
    %75 = vector.shape_cast %74 : vector<1x8x128xf32> to vector<8x128xf32>
    %76 = vector.shape_cast %73 : vector<1x8x128xf32> to vector<8x128xf32>
    %77 = arith.addf %75, %76 : vector<8x128xf32>
    %c0_25 = arith.constant 0 : index
    %c0_26 = arith.constant 0 : index
    %c0_27 = arith.constant 0 : index
    %78 = vector.load %arg8[%c0_25, %c0_26, %c0_27] : memref<1x8x128xf32, #tpu.memory_space<vmem>>, vector<1x8x128xf32>
    %79 = vector.shape_cast %78 : vector<1x8x128xf32> to vector<8x128xf32>
    %80 = vector.shape_cast %77 : vector<8x128xf32> to vector<1x8x128xf32>
    tpu.vector_store %arg8[%c0_25, %c0_26, %c0_27], %80 {strides = array<i32>} : memref<1x8x128xf32, #tpu.memory_space<vmem>>, vector<1x8x128xf32>,
    %c0_28 = arith.constant 0 : index
    %c0_29 = arith.constant 0 : index
    %c0_30 = arith.constant 0 : index
    %81 = vector.load %arg9[%c0_28, %c0_29, %c0_30] : memref<1x8x128xf32, #tpu.memory_space<vmem>>, vector<1x8x128xf32>
    %82 = vector.shape_cast %81 : vector<1x8x128xf32> to vector<8x128xf32>
    %83 = arith.extui %35 : vector<8x128xi1> to vector<8x128xi32>
    %84 = arith.sitofp %83 : vector<8x128xi32> to vector<8x128xf32>
    %85 = arith.addf %82, %84 : vector<8x128xf32>
    %c0_31 = arith.constant 0 : index
    %c0_32 = arith.constant 0 : index
    %c0_33 = arith.constant 0 : index
    %86 = vector.load %arg9[%c0_31, %c0_32, %c0_33] : memref<1x8x128xf32, #tpu.memory_space<vmem>>, vector<1x8x128xf32>
    %87 = vector.shape_cast %86 : vector<1x8x128xf32> to vector<8x128xf32>
    %88 = vector.shape_cast %85 : vector<8x128xf32> to vector<1x8x128xf32>
    tpu.vector_store %arg9[%c0_31, %c0_32, %c0_33], %88 {strides = array<i32>} : memref<1x8x128xf32, #tpu.memory_space<vmem>>, vector<1x8x128xf32>,
    %c0_34 = arith.constant 0 : index
    %c0_35 = arith.constant 0 : index
    %c0_36 = arith.constant 0 : index
    %c0_37 = arith.constant 0 : index
    %89 = vector.load %arg5[%c0_34, %c0_35, %c0_36, %c0_37] : memref<1x4x8x128xf32, #tpu.memory_space<vmem>>, vector<1x4x8x128xf32>
    %90 = vector.shape_cast %89 : vector<1x4x8x128xf32> to vector<4x8x128xf32>
    %91 = arith.extui %39 : vector<4x8x128xi1> to vector<4x8x128xi32>
    %92 = arith.sitofp %91 : vector<4x8x128xi32> to vector<4x8x128xf32>
    %93 = arith.addf %90, %92 : vector<4x8x128xf32>
    %c0_38 = arith.constant 0 : index
    %c0_39 = arith.constant 0 : index
    %c0_40 = arith.constant 0 : index
    %c0_41 = arith.constant 0 : index
    %94 = vector.load %arg5[%c0_38, %c0_39, %c0_40, %c0_41] : memref<1x4x8x128xf32, #tpu.memory_space<vmem>>, vector<1x4x8x128xf32>
    %95 = vector.shape_cast %94 : vector<1x4x8x128xf32> to vector<4x8x128xf32>
    %96 = vector.shape_cast %93 : vector<4x8x128xf32> to vector<1x4x8x128xf32>
    tpu.vector_store %arg5[%c0_38, %c0_39, %c0_40, %c0_41], %96 {strides = array<i32>} : memref<1x4x8x128xf32, #tpu.memory_space<vmem>>, vector<1x4x8x128xf32>,
    %c0_42 = arith.constant 0 : index
    %c0_43 = arith.constant 0 : index
    %c0_44 = arith.constant 0 : index
    %c0_45 = arith.constant 0 : index
    %97 = vector.load %arg6[%c0_42, %c0_43, %c0_44, %c0_45] : memref<1x4x8x128xf32, #tpu.memory_space<vmem>>, vector<1x4x8x128xf32>
    %98 = vector.shape_cast %97 : vector<1x4x8x128xf32> to vector<4x8x128xf32>
    %99 = arith.addf %98, %53 : vector<4x8x128xf32>
    %c0_46 = arith.constant 0 : index
    %c0_47 = arith.constant 0 : index
    %c0_48 = arith.constant 0 : index
    %c0_49 = arith.constant 0 : index
    %100 = vector.load %arg6[%c0_46, %c0_47, %c0_48, %c0_49] : memref<1x4x8x128xf32, #tpu.memory_space<vmem>>, vector<1x4x8x128xf32>
    %101 = vector.shape_cast %100 : vector<1x4x8x128xf32> to vector<4x8x128xf32>
    %102 = vector.shape_cast %99 : vector<4x8x128xf32> to vector<1x4x8x128xf32>
    tpu.vector_store %arg6[%c0_46, %c0_47, %c0_48, %c0_49], %102 {strides = array<i32>} : memref<1x4x8x128xf32, #tpu.memory_space<vmem>>, vector<1x4x8x128xf32>,
    %c0_50 = arith.constant 0 : index
    %c0_51 = arith.constant 0 : index
    %c0_52 = arith.constant 0 : index
    %c0_53 = arith.constant 0 : index
    %103 = vector.load %arg7[%c0_50, %c0_51, %c0_52, %c0_53] : memref<1x4x8x128xf32, #tpu.memory_space<vmem>>, vector<1x4x8x128xf32>
    %104 = vector.shape_cast %103 : vector<1x4x8x128xf32> to vector<4x8x128xf32>
    %cst_54 = arith.constant 0.000000e+00 : f32
    %105 = vector.broadcast %cst_54 : f32 to vector<4x8x128xf32>
    %106 = arith.select %39, %53, %105 : vector<4x8x128xi1>, vector<4x8x128xf32>
    %107 = arith.addf %104, %106 : vector<4x8x128xf32>
    %c0_55 = arith.constant 0 : index
    %c0_56 = arith.constant 0 : index
    %c0_57 = arith.constant 0 : index
    %c0_58 = arith.constant 0 : index
    %108 = vector.load %arg7[%c0_55, %c0_56, %c0_57, %c0_58] : memref<1x4x8x128xf32, #tpu.memory_space<vmem>>, vector<1x4x8x128xf32>
    %109 = vector.shape_cast %108 : vector<1x4x8x128xf32> to vector<4x8x128xf32>
    %110 = vector.shape_cast %107 : vector<4x8x128xf32> to vector<1x4x8x128xf32>
    tpu.vector_store %arg7[%c0_55, %c0_56, %c0_57, %c0_58], %110 {strides = array<i32>} : memref<1x4x8x128xf32, #tpu.memory_space<vmem>>, vector<1x4x8x128xf32>,
    return
  }
  func.func @transform_0(%arg0: i32, %arg1: i32, %arg2: memref<2xi32, #tpu.memory_space<smem>>) -> (i32, i32, i32, i32) {
    %c0_i32 = arith.constant 0 : i32
    %c0_i32_0 = arith.constant 0 : i32
    %c0_i32_1 = arith.constant 0 : i32
    return %arg0, %c0_i32, %arg1, %c0_i32_0 : i32, i32, i32, i32
  }
  func.func @transform_1(%arg0: i32, %arg1: i32, %arg2: memref<2xi32, #tpu.memory_space<smem>>) -> (i32, i32, i32) {
    %c0_i32 = arith.constant 0 : i32
    %c0_i32_0 = arith.constant 0 : i32
    return %arg0, %arg1, %c0_i32 : i32, i32, i32
  }
  func.func @transform_2(%arg0: i32, %arg1: i32, %arg2: memref<2xi32, #tpu.memory_space<smem>>) -> (i32, i32, i32, i32) {
    %c0_i32 = arith.constant 0 : i32
    %c0_i32_0 = arith.constant 0 : i32
    %c0_i32_1 = arith.constant 0 : i32
    %c0_i32_2 = arith.constant 0 : i32
    return %arg0, %c0_i32, %c0_i32_0, %c0_i32_1 : i32, i32, i32, i32
  }
  func.func @transform_3(%arg0: i32, %arg1: i32, %arg2: memref<2xi32, #tpu.memory_space<smem>>) -> (i32, i32, i32, i32) {
    %c0_i32 = arith.constant 0 : i32
    %c0_i32_0 = arith.constant 0 : i32
    %c0_i32_1 = arith.constant 0 : i32
    %c0_i32_2 = arith.constant 0 : i32
    return %arg0, %c0_i32, %c0_i32_0, %c0_i32_1 : i32, i32, i32, i32
  }
  func.func @transform_4(%arg0: i32, %arg1: i32, %arg2: memref<2xi32, #tpu.memory_space<smem>>) -> (i32, i32, i32, i32) {
    %c0_i32 = arith.constant 0 : i32
    %c0_i32_0 = arith.constant 0 : i32
    %c0_i32_1 = arith.constant 0 : i32
    %c0_i32_2 = arith.constant 0 : i32
    return %arg0, %c0_i32, %c0_i32_0, %c0_i32_1 : i32, i32, i32, i32
  }
  func.func @transform_5(%arg0: i32, %arg1: i32, %arg2: memref<2xi32, #tpu.memory_space<smem>>) -> (i32, i32, i32) {
    %c0_i32 = arith.constant 0 : i32
    %c0_i32_0 = arith.constant 0 : i32
    %c0_i32_1 = arith.constant 0 : i32
    return %arg0, %c0_i32, %c0_i32_0 : i32, i32, i32
  }
  func.func @transform_6(%arg0: i32, %arg1: i32, %arg2: memref<2xi32, #tpu.memory_space<smem>>) -> (i32, i32, i32) {
    %c0_i32 = arith.constant 0 : i32
    %c0_i32_0 = arith.constant 0 : i32
    %c0_i32_1 = arith.constant 0 : i32
    return %arg0, %c0_i32, %c0_i32_0 : i32, i32, i32
  }
}

</mosaic_0001>

<llo_original>
// kernel: lsce_gd_loss.1
$region0: #{lsce_gd_loss.1}
  #allocation0 [shape = 'u32[]', space=smem, size = 0x4, offset = 0x4, fixed_abs, tag = 'smem constant byte address 0x4 - core index']
  #allocation1 [shape = 'u32[144,128]{1,0:T(1,128)}', space=vmem, size = 0x12000, scoped, tag = 'internal scratch']
  #allocation2 [shape = 's32[1]{0}', space=sflag, size = 0x4, scoped, tag = 'scoped memory for lsce_gd_loss.1']
  #allocation3 [shape = 'u8[512]{0}', space=smem, size = 0x200, scoped, tag = 'prefetched SMEM operand 0']
  %s0 = inlined_call_operand.vmem [shape: s32[2], index: 0, kind: input, shape index: {}]
  %s1 = inlined_call_operand.vmem [shape: f32[2,4,8,128], index: 1, kind: input, shape index: {}]
  %s2 = inlined_call_operand.vmem [shape: s32[2,8,128], index: 2, kind: input, shape index: {}]
  %s3 = inlined_call_operand.vmem [shape: f32[2,4,8,128], index: 3, kind: output, shape index: {0}]
  %s4 = inlined_call_operand.vmem [shape: f32[2,4,8,128], index: 4, kind: output, shape index: {1}]
  %s5 = inlined_call_operand.vmem [shape: f32[2,4,8,128], index: 5, kind: output, shape index: {2}]
  %s6 = inlined_call_operand.vmem [shape: f32[2,8,128], index: 6, kind: output, shape index: {3}]
  %s7 = inlined_call_operand.vmem [shape: f32[2,8,128], index: 7, kind: output, shape index: {4}]
  %8 = xla_tuple %s3, %s4, %s5, %s6, %s7
  %s9 = sld [smem:[#allocation0]]
  $region77: #{lsce_gd_loss.1} parent=0
    _
  %s11 = ssub.s32 1, %s9
  %s12 = scalar_select 0, %s11, %s9
  %s13 = sshll.u32 %s0, 4
  %s14 = int_to_ptr.vmem [resolvable:$true] %s13
  %16 = dma.vmem_to_smem %s14, 16, [#allocation3], [#allocation2]
  %17 = dma.done [#allocation2], 16
  %18 = sfence
  loop: start=0, step=1, limit=4
  $region2: #{lsce_gd_loss.1} parent=0 // loop_pre_header
    _
  $region3: #{lsce_gd_loss.1} parent=0 // loop_header
    %s20 = sphi 0, %s24
    %p21 = scmp.ge.s32.totalorder %s20, 4
    %s27 = sphi 0, %s39
    %s28 = sphi 0, %s35
    %s29 = sphi 0, %s27
    %s30 = sphi 0, %s28
    %s31 = sphi 0, %s29
    %s32 = sphi 0, %s30
    %s44 = sphi 0, %s46
    %s47 = sphi 0, %s44
    %s48 = sphi 0, %s47
    %s64 = sphi 0, %s48
    %s72 = sphi 0, %s74
    %s75 = sphi 0, %s72
    %s76 = sphi 0, %s75
    %s92 = sphi 0, %s76
    %s98 = sphi 0, %s100
    %s101 = sphi 0, %s98
    %s102 = sphi 0, %s101
    %s118 = sphi 0, %s102
    %s124 = sphi 0, %s126
    %s127 = sphi 0, %s124
    %s128 = sphi 0, %s127
    %s144 = sphi 0, %s128
    %s150 = sphi 0, %s152
    %s153 = sphi 0, %s150
    %s154 = sphi 0, %s153
    %s170 = sphi 0, %s154
    %s176 = sphi 0, %s178
    %s179 = sphi 0, %s176
    %s180 = sphi 0, %s179
    %s196 = sphi 0, %s180
    %s202 = sphi 0, %s204
    %s205 = sphi 0, %s202
    %s206 = sphi 0, %s205
    %s222 = sphi 0, %s206
  $region4: #{lsce_gd_loss.1} parent=0 // loop_header_branch
    %23 = sbr.rel (%p21) target = $region8
  $region5: #{lsce_gd_loss.1} parent=0 // loop_body
    %s25 = ssub.s32 %s20, 1
    %s26 = ssub.s32 %s20, 2
    %s33 = sadd.s32 1, %s28
    %p34 = scmp.ge.s32.totalorder %s33, 1
    %s35 = scalar_select %p34, 0, %s33
    %s36 = sadd.s32 1, %s27
    %s37 = scalar_select %p34, %s36, %s27
    %p38 = scmp.ge.s32.totalorder %s37, 2
    %s39 = scalar_select %p38, 0, %s37
    %s40 = ssub.s32 %s27, %s39
    %s41 = ssub.s32 %s28, %s35
    %s42 = sor.u32 %s40, %s41
    %p43 = scmp.eq.s32.totalorder %s42, 0
    %s45 = sadd.s32 %s44, 1
    %s46 = scalar_select %p43, %s44, %s45
    %p49 = pneg %p43
    %p50 = scmp.eq.s32.totalorder %s20, 1
    %p51 = por %p49, %p50
    %p52 = scmp.ne.s32.totalorder %s44, %s47
    %p53 = scmp.eq.s32.totalorder %s20, 0
    %p54 = por %p52, %p53
    %p55 = scmp.ne.s32.totalorder %s44, %s47
    %p56 = scmp.eq.s32.totalorder %s25, 1
    %p57 = por %p55, %p56
    %p58 = scmp.ne.s32.totalorder %s47, %s48
    %p59 = scmp.eq.s32.totalorder %s25, 0
    %p60 = por %p58, %p59
    %p61 = scmp.ne.s32.totalorder %s47, %s48
    %p62 = scmp.eq.s32.totalorder %s26, 1
    %p63 = por %p61, %p62
    %p65 = scmp.ne.s32.totalorder %s48, %s64
    %p66 = scmp.eq.s32.totalorder %s26, 0
    %p67 = por %p65, %p66
    %s68 = ssub.s32 %s27, %s39
    %s69 = ssub.s32 %s28, %s35
    %s70 = sor.u32 %s68, %s69
    %p71 = scmp.eq.s32.totalorder %s70, 0
    %s73 = sadd.s32 %s72, 1
    %s74 = scalar_select %p71, %s72, %s73
    %p77 = pneg %p71
    %p78 = scmp.eq.s32.totalorder %s20, 1
    %p79 = por %p77, %p78
    %p80 = scmp.ne.s32.totalorder %s72, %s75
    %p81 = scmp.eq.s32.totalorder %s20, 0
    %p82 = por %p80, %p81
    %p83 = scmp.ne.s32.totalorder %s72, %s75
    %p84 = scmp.eq.s32.totalorder %s25, 1
    %p85 = por %p83, %p84
    %p86 = scmp.ne.s32.totalorder %s75, %s76
    %p87 = scmp.eq.s32.totalorder %s25, 0
    %p88 = por %p86, %p87
    %p89 = scmp.ne.s32.totalorder %s75, %s76
    %p90 = scmp.eq.s32.totalorder %s26, 1
    %p91 = por %p89, %p90
    %p93 = scmp.ne.s32.totalorder %s76, %s92
    %p94 = scmp.eq.s32.totalorder %s26, 0
    %p95 = por %p93, %p94
    %s96 = ssub.s32 %s27, %s39
    %p97 = scmp.eq.s32.totalorder %s96, 0
    %s99 = sadd.s32 %s98, 1
    %s100 = scalar_select %p97, %s98, %s99
    %p103 = pneg %p97
    %p104 = scmp.eq.s32.totalorder %s20, 1
    %p105 = por %p103, %p104
    %p106 = scmp.ne.s32.totalorder %s98, %s101
    %p107 = scmp.eq.s32.totalorder %s20, 0
    %p108 = por %p106, %p107
    %p109 = scmp.ne.s32.totalorder %s98, %s101
    %p110 = scmp.eq.s32.totalorder %s25, 1
    %p111 = por %p109, %p110
    %p112 = scmp.ne.s32.totalorder %s101, %s102
    %p113 = scmp.eq.s32.totalorder %s25, 0
    %p114 = por %p112, %p113
    %p115 = scmp.ne.s32.totalorder %s101, %s102
    %p116 = scmp.eq.s32.totalorder %s26, 1
    %p117 = por %p115, %p116
    %p119 = scmp.ne.s32.totalorder %s102, %s118
    %p120 = scmp.eq.s32.totalorder %s26, 0
    %p121 = por %p119, %p120
    %s122 = ssub.s32 %s27, %s39
    %p123 = scmp.eq.s32.totalorder %s122, 0
    %s125 = sadd.s32 %s124, 1
    %s126 = scalar_select %p123, %s124, %s125
    %p129 = pneg %p123
    %p130 = scmp.eq.s32.totalorder %s20, 1
    %p131 = por %p129, %p130
    %p132 = scmp.ne.s32.totalorder %s124, %s127
    %p133 = scmp.eq.s32.totalorder %s20, 0
    %p134 = por %p132, %p133
    %p135 = scmp.ne.s32.totalorder %s124, %s127
    %p136 = scmp.eq.s32.totalorder %s25, 1
    %p137 = por %p135, %p136
    %p138 = scmp.ne.s32.totalorder %s127, %s128
    %p139 = scmp.eq.s32.totalorder %s25, 0
    %p140 = por %p138, %p139
    %p141 = scmp.ne.s32.totalorder %s127, %s128
    %p142 = scmp.eq.s32.totalorder %s26, 1
    %p143 = por %p141, %p142
    %p145 = scmp.ne.s32.totalorder %s128, %s144
    %p146 = scmp.eq.s32.totalorder %s26, 0
    %p147 = por %p145, %p146
    %s148 = ssub.s32 %s27, %s39
    %p149 = scmp.eq.s32.totalorder %s148, 0
    %s151 = sadd.s32 %s150, 1
    %s152 = scalar_select %p149, %s150, %s151
    %p155 = pneg %p149
    %p156 = scmp.eq.s32.totalorder %s20, 1
    %p157 = por %p155, %p156
    %p158 = scmp.ne.s32.totalorder %s150, %s153
    %p159 = scmp.eq.s32.totalorder %s20, 0
    %p160 = por %p158, %p159
    %p161 = scmp.ne.s32.totalorder %s150, %s153
    %p162 = scmp.eq.s32.totalorder %s25, 1
    %p163 = por %p161, %p162
    %p164 = scmp.ne.s32.totalorder %s153, %s154
    %p165 = scmp.eq.s32.totalorder %s25, 0
    %p166 = por %p164, %p165
    %p167 = scmp.ne.s32.totalorder %s153, %s154
    %p168 = scmp.eq.s32.totalorder %s26, 1
    %p169 = por %p167, %p168
    %p171 = scmp.ne.s32.totalorder %s154, %s170
    %p172 = scmp.eq.s32.totalorder %s26, 0
    %p173 = por %p171, %p172
    %s174 = ssub.s32 %s27, %s39
    %p175 = scmp.eq.s32.totalorder %s174, 0
    %s177 = sadd.s32 %s176, 1
    %s178 = scalar_select %p175, %s176, %s177
    %p181 = pneg %p175
    %p182 = scmp.eq.s32.totalorder %s20, 1
    %p183 = por %p181, %p182
    %p184 = scmp.ne.s32.totalorder %s176, %s179
    %p185 = scmp.eq.s32.totalorder %s20, 0
    %p186 = por %p184, %p185
    %p187 = scmp.ne.s32.totalorder %s176, %s179
    %p188 = scmp.eq.s32.totalorder %s25, 1
    %p189 = por %p187, %p188
    %p190 = scmp.ne.s32.totalorder %s179, %s180
    %p191 = scmp.eq.s32.totalorder %s25, 0
    %p192 = por %p190, %p191
    %p193 = scmp.ne.s32.totalorder %s179, %s180
    %p194 = scmp.eq.s32.totalorder %s26, 1
    %p195 = por %p193, %p194
    %p197 = scmp.ne.s32.totalorder %s180, %s196
    %p198 = scmp.eq.s32.totalorder %s26, 0
    %p199 = por %p197, %p198
    %s200 = ssub.s32 %s27, %s39
    %p201 = scmp.eq.s32.totalorder %s200, 0
    %s203 = sadd.s32 %s202, 1
    %s204 = scalar_select %p201, %s202, %s203
    %p207 = pneg %p201
    %p208 = scmp.eq.s32.totalorder %s20, 1
    %p209 = por %p207, %p208
    %p210 = scmp.ne.s32.totalorder %s202, %s205
    %p211 = scmp.eq.s32.totalorder %s20, 0
    %p212 = por %p210, %p211
    %p213 = scmp.ne.s32.totalorder %s202, %s205
    %p214 = scmp.eq.s32.totalorder %s25, 1
    %p215 = por %p213, %p214
    %p216 = scmp.ne.s32.totalorder %s205, %s206
    %p217 = scmp.eq.s32.totalorder %s25, 0
    %p218 = por %p216, %p217
    %p219 = scmp.ne.s32.totalorder %s205, %s206
    %p220 = scmp.eq.s32.totalorder %s26, 1
    %p221 = por %p219, %p220
    %p223 = scmp.ne.s32.totalorder %s206, %s222
    %p224 = scmp.eq.s32.totalorder %s26, 0
    %p225 = por %p223, %p224
    %p226 = scmp.le.s32.totalorder 1, %s20
    %p227 = scmp.lt.s32.totalorder %s20, 3
    %p228 = pnand %p226, %p227
    %p229 = pneg %p228
    // Predicated region
    $region9: #{lsce_gd_loss.1} parent=5 // pred_check
      _
    $region10: #{lsce_gd_loss.1} parent=5 // pred_check_branch
      %231 = sbr.rel (%p228) target = $region12
    $region11: #{lsce_gd_loss.1} parent=5 // pred_region
      %s232 = ssub.s32 %s20, 1
    $region12: #{lsce_gd_loss.1} parent=5 // pred_fallthru
      _
    %p233 = scmp.lt.s32.totalorder %s20, 2
    // Predicated region
    $region13: #{lsce_gd_loss.1} parent=5 // pred_check
      %p234 = pneg %p233
    $region14: #{lsce_gd_loss.1} parent=5 // pred_check_branch
      %236 = sbr.rel (%p234) target = $region16
    $region15: #{lsce_gd_loss.1} parent=5 // pred_region
      // Predicated region
      $region17: #{lsce_gd_loss.1} parent=15 // pred_check
        %p237 = pneg %p54
      $region18: #{lsce_gd_loss.1} parent=15 // pred_check_branch
        %239 = sbr.rel (%p237) target = $region20
      $region19: #{lsce_gd_loss.1} parent=15 // pred_region
        %p240 = scmp.lt.s32.totalorder %s27, 1
        %s241 = scalar_select %p240, %s27, 1
        %p242 = scmp.lt.s32.totalorder %s28, 0
        %s243 = scalar_select %p242, %s28, 0
        %s244 = smul.addr %s241, 4
        %s245 = sadd.s32 %s243, %s244
        %s246 = smul.addr %s245, 8
        %s247 = scalar_lea.vmem %s1, %s246
      $region20: #{lsce_gd_loss.1} parent=15 // pred_fallthru
        _
      // Predicated region
      $region21: #{lsce_gd_loss.1} parent=15 // pred_check
        %p248 = pneg %p82
      $region22: #{lsce_gd_loss.1} parent=15 // pred_check_branch
        %250 = sbr.rel (%p248) target = $region24
      $region23: #{lsce_gd_loss.1} parent=15 // pred_region
        %p251 = scmp.lt.s32.totalorder %s27, 1
        %s252 = scalar_select %p251, %s27, 1
        %p253 = scmp.lt.s32.totalorder %s28, 0
        %s254 = scalar_select %p253, %s28, 0
        %s255 = sadd.s32 %s254, %s252
        %s256 = smul.addr %s255, 8
        %s257 = scalar_lea.vmem %s2, %s256
      $region24: #{lsce_gd_loss.1} parent=15 // pred_fallthru
        _
    $region16: #{lsce_gd_loss.1} parent=5 // pred_fallthru
      _
    %p258 = scmp.le.s32.totalorder 1, %s20
    %p259 = scmp.lt.s32.totalorder %s20, 3
    %p260 = pnand %p258, %p259
    %p261 = pneg %p260
    // Predicated region
    $region25: #{lsce_gd_loss.1} parent=5 // pred_check
      _
    $region26: #{lsce_gd_loss.1} parent=5 // pred_check_branch
      %263 = sbr.rel (%p260) target = $region28
    $region27: #{lsce_gd_loss.1} parent=5 // pred_region
      %s264 = ssub.s32 %s20, 1
      %p265 = scmp.lt.s32.totalorder %s29, 1
      %s266 = scalar_select %p265, %s29, 1
      %p267 = scmp.lt.s32.totalorder %s30, 0
      %s268 = scalar_select %p267, %s30, 0
      %s269 = smul.addr %s266, 4
      %s270 = sadd.s32 %s268, %s269
      %s271 = smul.addr %s270, 8
      %s272 = scalar_lea.vmem %s1, %s271
      %p273 = pneg %p60
      %p274 = pneg %p57
      %p275 = scmp.lt.s32.totalorder %s29, 1
      %s276 = scalar_select %p275, %s29, 1
      %p277 = scmp.lt.s32.totalorder %s30, 0
      %s278 = scalar_select %p277, %s30, 0
      %s279 = sadd.s32 %s278, %s276
      %s280 = smul.addr %s279, 8
      %s281 = scalar_lea.vmem %s2, %s280
      %p282 = pneg %p88
      %p283 = pneg %p85
      %p284 = pneg %p114
      %p285 = pneg %p111
      %p286 = scmp.lt.s32.totalorder %s29, 1
      %s287 = scalar_select %p286, %s29, 1
      %s288 = smul.addr %s287, 4
      %s289 = smul.addr %s288, 8
      %s290 = scalar_lea.vmem %s3, %s289
      %p291 = pneg %p140
      %p292 = pneg %p137
      %p293 = scmp.lt.s32.totalorder %s29, 1
      %s294 = scalar_select %p293, %s29, 1
      %s295 = smul.addr %s294, 4
      %s296 = smul.addr %s295, 8
      %s297 = scalar_lea.vmem %s4, %s296
      %p298 = pneg %p166
      %p299 = pneg %p163
      %p300 = scmp.lt.s32.totalorder %s29, 1
      %s301 = scalar_select %p300, %s29, 1
      %s302 = smul.addr %s301, 4
      %s303 = smul.addr %s302, 8
      %s304 = scalar_lea.vmem %s5, %s303
      %p305 = pneg %p192
      %p306 = pneg %p189
      %p307 = scmp.lt.s32.totalorder %s29, 1
      %s308 = scalar_select %p307, %s29, 1
      %s309 = smul.addr %s308, 8
      %s310 = scalar_lea.vmem %s6, %s309
      %p311 = pneg %p218
      %p312 = pneg %p215
      %p313 = scmp.lt.s32.totalorder %s29, 1
      %s314 = scalar_select %p313, %s29, 1
      %s315 = smul.addr %s314, 8
      %s316 = scalar_lea.vmem %s7, %s315
      %p317 = scmp.lt.s32.totalorder %s29, 1
      %s318 = scalar_select %p317, %s29, 1
      %p319 = scmp.lt.s32.totalorder %s30, 0
      %s320 = scalar_select %p319, %s30, 0
      %s321 = smul.addr %s318, 4
      %s322 = sadd.s32 %s320, %s321
      %s323 = smul.addr %s322, 8
      %s324 = scalar_lea.vmem %s1, %s323
      %p325 = scmp.lt.s32.totalorder %s29, 1
      %s326 = scalar_select %p325, %s29, 1
      %p327 = scmp.lt.s32.totalorder %s30, 0
      %s328 = scalar_select %p327, %s30, 0
      %s329 = sadd.s32 %s328, %s326
      %s330 = smul.addr %s329, 8
      %s331 = scalar_lea.vmem %s2, %s330
      %p332 = scmp.lt.s32.totalorder %s29, 1
      %s333 = scalar_select %p332, %s29, 1
      %s334 = smul.addr %s333, 4
      %s335 = smul.addr %s334, 8
      %s336 = scalar_lea.vmem %s3, %s335
      %p337 = scmp.lt.s32.totalorder %s29, 1
      %s338 = scalar_select %p337, %s29, 1
      %s339 = smul.addr %s338, 4
      %s340 = smul.addr %s339, 8
      %s341 = scalar_lea.vmem %s4, %s340
      %p342 = scmp.lt.s32.totalorder %s29, 1
      %s343 = scalar_select %p342, %s29, 1
      %s344 = smul.addr %s343, 4
      %s345 = smul.addr %s344, 8
      %s346 = scalar_lea.vmem %s5, %s345
      %p347 = scmp.lt.s32.totalorder %s29, 1
      %s348 = scalar_select %p347, %s29, 1
      %s349 = smul.addr %s348, 8
      %s350 = scalar_lea.vmem %s6, %s349
      %p351 = scmp.lt.s32.totalorder %s29, 1
      %s352 = scalar_select %p351, %s29, 1
      %s353 = smul.addr %s352, 8
      %s354 = scalar_lea.vmem %s7, %s353
      %p355 = scmp.eq.s32.totalorder %s30, 0
      // Predicated region
      $region29: #{lsce_gd_loss.1} parent=27 // pred_check
        %p356 = pneg %p355
      $region30: #{lsce_gd_loss.1} parent=27 // pred_check_branch
        %358 = sbr.rel (%p356) target = $region32
      $region31: #{lsce_gd_loss.1} parent=27 // pred_region
        %359 = vst [vmem:[%s336] sm:$0xff] 0.0
        %360 = vst [vmem:[%s336 + $0x8] sm:$0xff] 0.0
        %361 = vst [vmem:[%s336 + $0x10] sm:$0xff] 0.0
        %362 = vst [vmem:[%s336 + $0x18] sm:$0xff] 0.0
        %363 = vst [vmem:[%s341] sm:$0xff] 0.0
        %364 = vst [vmem:[%s341 + $0x8] sm:$0xff] 0.0
        %365 = vst [vmem:[%s341 + $0x10] sm:$0xff] 0.0
        %366 = vst [vmem:[%s341 + $0x18] sm:$0xff] 0.0
        %367 = vst [vmem:[%s346] sm:$0xff] 0.0
        %368 = vst [vmem:[%s346 + $0x8] sm:$0xff] 0.0
        %369 = vst [vmem:[%s346 + $0x10] sm:$0xff] 0.0
        %370 = vst [vmem:[%s346 + $0x18] sm:$0xff] 0.0
        %371 = vst [vmem:[%s350] sm:$0xff] 0.0
        %372 = vst [vmem:[%s354] sm:$0xff] 0.0
      $region32: #{lsce_gd_loss.1} parent=27 // pred_fallthru
        _
      %s373 = sld [smem:[#allocation3]]
      %s374 = sld [smem:[#allocation3 + $0x1]]
      %v375 = vld [vmem:[%s324] sm:$0xff]
      %v376 = vld [vmem:[%s324 + $0x8] sm:$0xff]
      %v377 = vld [vmem:[%s324 + $0x10] sm:$0xff]
      %v378 = vld [vmem:[%s324 + $0x18] sm:$0xff]
      %v379 = vld [vmem:[%s331] sm:$0xff]
      %v380 = vlaneseq
      %v381 = vshrl.u32 %v380, 7
      %v382 = vlaneseq
      %v383 = vand.u32 %v382, 127
      %s384 = smul.u32 %s30, 8
      %v385 = vstv %s384
      %v386 = vadd.s32 %v385, %v381
      %v387 = vmul.u32 %v386, 128
      %v388 = vadd.s32 %v387, %v383
      %vm389 = vcmp.lt.s32.totalorder %v388, 256
      %v390 = vsel %vm389, 1, 0
      %vm391 = vcmp.eq.s32.totalorder %v390, 1
      %v392 = vsel %vm391, %v375, 0.0
      %v393 = vsel %vm391, %v376, 0.0
      %v394 = vsel %vm391, %v377, 0.0
      %v395 = vsel %vm391, %v378, 0.0
      %vm396 = vcmp.eq.s32.totalorder %v379, 255
      %p397 = scmp.ne.s32.totalorder %s374, 0
      %s398 = scalar_select %p397, 1, 0
      %v399 = vstv %s398
      %vm400 = vcmp.eq.s32.totalorder %v399, 1
      %vm401 = vmand %vm396, %vm400
      %v402 = vstv %s373
      %v403 = vsel %vm401, %v402, %v379
      %v404 = vsel %vm389, %v403, 4294967295
      %vm405 = vmxor %vm396, 1
      %vm406 = vmand %vm405, %vm389
      %vm407 = vcmp.eq.s32.totalorder %v404, 0
      %vm408 = vcmp.eq.s32.totalorder %v404, 1
      %vm409 = vcmp.eq.s32.totalorder %v404, 2
      %vm410 = vcmp.eq.s32.totalorder %v404, 3
      %v411 = vmax.f32 %v392, %v393
      %v412 = vmax.f32 %v394, %v395
      %v413 = vmax.f32 %v411, %v412
      %v414 = vsub.f32 %v392, %v413
      %v415 = vsub.f32 %v393, %v413
      %v416 = vsub.f32 %v394, %v413
      %v417 = vsub.f32 %v395, %v413
      %v418 = vmul.f32 %v414, 1.442695
      %v419 = vpow.pop %v418
      %v420 = vmul.f32 %v415, 1.442695
      %v421 = vpow.pop %v420
      %v422 = vmul.f32 %v416, 1.442695
      %v423 = vpow.pop %v422
      %v424 = vmul.f32 %v417, 1.442695
      %v425 = vpow.pop %v424
      %v426 = vadd.f32 %v419, %v421
      %v427 = vadd.f32 %v426, %v423
      %v428 = vadd.f32 %v427, %v425
      %v429 = vlog2.pop %v428
      %v430 = vmul.f32 %v429, 0.6931472
      %v431 = vrcp.pop %v428
      %v432 = vsel %vm389, %v431, 0.0
      %v433 = vmul.f32 %v419, %v432
      %v434 = vmul.f32 %v421, %v432
      %v435 = vmul.f32 %v423, %v432
      %v436 = vmul.f32 %v425, %v432
      %v437 = vadd.f32 %v414, %v415
      %v438 = vadd.f32 %v437, %v416
      %v439 = vadd.f32 %v438, %v417
      %v440 = vsel %vm407, %v414, 0.0
      %v441 = vsel %vm408, %v415, 0.0
      %v442 = vsel %vm409, %v416, 0.0
      %v443 = vsel %vm410, %v417, 0.0
      %v444 = vadd.f32 %v440, %v441
      %v445 = vadd.f32 %v444, %v442
      %v446 = vadd.f32 %v445, %v443
      %v447 = vmul.f32 %v430, 4.0
      %v448 = vsub.f32 %v439, %v447
      %v449 = vsub.f32 %v446, %v430
      %v450 = vmul.f32 %v448, 0.025
      %v451 = vmul.f32 %v449, 0.875
      %v452 = vadd.f32 %v450, %v451
      %v453 = vsub.f32 0.0, %v452
      %v454 = vsel %vm406, %v453, 0.0
      %v455 = vld [vmem:[%s350] sm:$0xff]
      %v456 = vadd.f32 %v455, %v454
      %457 = vst [vmem:[%s350] sm:$0xff] %v456
      %v458 = vld [vmem:[%s354] sm:$0xff]
      %v459 = vsel %vm406, 1, 0
      %v460 = vcvt.s32.f32 %v459
      %v461 = vadd.f32 %v458, %v460
      %462 = vst [vmem:[%s354] sm:$0xff] %v461
      %v463 = vld [vmem:[%s336] sm:$0xff]
      %v464 = vld [vmem:[%s336 + $0x8] sm:$0xff]
      %v465 = vld [vmem:[%s336 + $0x10] sm:$0xff]
      %v466 = vld [vmem:[%s336 + $0x18] sm:$0xff]
      %v467 = vsel %vm407, 1, 0
      %v468 = vsel %vm408, 1, 0
      %v469 = vsel %vm409, 1, 0
      %v470 = vsel %vm410, 1, 0
      %v471 = vcvt.s32.f32 %v467
      %v472 = vcvt.s32.f32 %v468
      %v473 = vcvt.s32.f32 %v469
      %v474 = vcvt.s32.f32 %v470
      %v475 = vadd.f32 %v463, %v471
      %v476 = vadd.f32 %v464, %v472
      %v477 = vadd.f32 %v465, %v473
      %v478 = vadd.f32 %v466, %v474
      %479 = vst [vmem:[%s336] sm:$0xff] %v475
      %480 = vst [vmem:[%s336 + $0x8] sm:$0xff] %v476
      %481 = vst [vmem:[%s336 + $0x10] sm:$0xff] %v477
      %482 = vst [vmem:[%s336 + $0x18] sm:$0xff] %v478
      %v483 = vld [vmem:[%s341] sm:$0xff]
      %v484 = vld [vmem:[%s341 + $0x8] sm:$0xff]
      %v485 = vld [vmem:[%s341 + $0x10] sm:$0xff]
      %v486 = vld [vmem:[%s341 + $0x18] sm:$0xff]
      %v487 = vadd.f32 %v483, %v433
      %v488 = vadd.f32 %v484, %v434
      %v489 = vadd.f32 %v485, %v435
      %v490 = vadd.f32 %v486, %v436
      %491 = vst [vmem:[%s341] sm:$0xff] %v487
      %492 = vst [vmem:[%s341 + $0x8] sm:$0xff] %v488
      %493 = vst [vmem:[%s341 + $0x10] sm:$0xff] %v489
      %494 = vst [vmem:[%s341 + $0x18] sm:$0xff] %v490
      %v495 = vld [vmem:[%s346] sm:$0xff]
      %v496 = vld [vmem:[%s346 + $0x8] sm:$0xff]
      %v497 = vld [vmem:[%s346 + $0x10] sm:$0xff]
      %v498 = vld [vmem:[%s346 + $0x18] sm:$0xff]
      %v499 = vsel %vm407, %v433, 0.0
      %v500 = vsel %vm408, %v434, 0.0
      %v501 = vsel %vm409, %v435, 0.0
      %v502 = vsel %vm410, %v436, 0.0
      %v503 = vadd.f32 %v495, %v499
      %v504 = vadd.f32 %v496, %v500
      %v505 = vadd.f32 %v497, %v501
      %v506 = vadd.f32 %v498, %v502
      %507 = vst [vmem:[%s346] sm:$0xff] %v503
      %508 = vst [vmem:[%s346 + $0x8] sm:$0xff] %v504
      %509 = vst [vmem:[%s346 + $0x10] sm:$0xff] %v505
      %510 = vst [vmem:[%s346 + $0x18] sm:$0xff] %v506
      %p511 = scmp.lt.s32.totalorder %s29, 1
      %s512 = scalar_select %p511, %s29, 1
      %s513 = smul.addr %s512, 4
      %s514 = smul.addr %s513, 8
      %s515 = scalar_lea.vmem %s3, %s514
      %p516 = scmp.lt.s32.totalorder %s29, 1
      %s517 = scalar_select %p516, %s29, 1
      %s518 = smul.addr %s517, 4
      %s519 = smul.addr %s518, 8
      %s520 = scalar_lea.vmem %s4, %s519
      %p521 = scmp.lt.s32.totalorder %s29, 1
      %s522 = scalar_select %p521, %s29, 1
      %s523 = smul.addr %s522, 4
      %s524 = smul.addr %s523, 8
      %s525 = scalar_lea.vmem %s5, %s524
      %p526 = scmp.lt.s32.totalorder %s29, 1
      %s527 = scalar_select %p526, %s29, 1
      %s528 = smul.addr %s527, 8
      %s529 = scalar_lea.vmem %s6, %s528
      %p530 = scmp.lt.s32.totalorder %s29, 1
      %s531 = scalar_select %p530, %s29, 1
      %s532 = smul.addr %s531, 8
      %s533 = scalar_lea.vmem %s7, %s532
      // Predicated region
      $region33: #{lsce_gd_loss.1} parent=27 // pred_check
        %p534 = pneg %p111
      $region34: #{lsce_gd_loss.1} parent=27 // pred_check_branch
        %536 = sbr.rel (%p534) target = $region36
      $region35: #{lsce_gd_loss.1} parent=27 // pred_region
        _
      $region36: #{lsce_gd_loss.1} parent=27 // pred_fallthru
        _
      // Predicated region
      $region37: #{lsce_gd_loss.1} parent=27 // pred_check
        %p537 = pneg %p137
      $region38: #{lsce_gd_loss.1} parent=27 // pred_check_branch
        %539 = sbr.rel (%p537) target = $region40
      $region39: #{lsce_gd_loss.1} parent=27 // pred_region
        _
      $region40: #{lsce_gd_loss.1} parent=27 // pred_fallthru
        _
      // Predicated region
      $region41: #{lsce_gd_loss.1} parent=27 // pred_check
        %p540 = pneg %p163
      $region42: #{lsce_gd_loss.1} parent=27 // pred_check_branch
        %542 = sbr.rel (%p540) target = $region44
      $region43: #{lsce_gd_loss.1} parent=27 // pred_region
        _
      $region44: #{lsce_gd_loss.1} parent=27 // pred_fallthru
        _
      // Predicated region
      $region45: #{lsce_gd_loss.1} parent=27 // pred_check
        %p543 = pneg %p189
      $region46: #{lsce_gd_loss.1} parent=27 // pred_check_branch
        %545 = sbr.rel (%p543) target = $region48
      $region47: #{lsce_gd_loss.1} parent=27 // pred_region
        _
      $region48: #{lsce_gd_loss.1} parent=27 // pred_fallthru
        _
      // Predicated region
      $region49: #{lsce_gd_loss.1} parent=27 // pred_check
        %p546 = pneg %p215
      $region50: #{lsce_gd_loss.1} parent=27 // pred_check_branch
        %548 = sbr.rel (%p546) target = $region52
      $region51: #{lsce_gd_loss.1} parent=27 // pred_region
        _
      $region52: #{lsce_gd_loss.1} parent=27 // pred_fallthru
        _
    $region28: #{lsce_gd_loss.1} parent=5 // pred_fallthru
      _
    %p549 = scmp.le.s32.totalorder 2, %s20
    // Predicated region
    $region53: #{lsce_gd_loss.1} parent=5 // pred_check
      %p550 = pneg %p549
    $region54: #{lsce_gd_loss.1} parent=5 // pred_check_branch
      %552 = sbr.rel (%p550) target = $region56
    $region55: #{lsce_gd_loss.1} parent=5 // pred_region
      %s553 = ssub.s32 %s20, 2
      // Predicated region
      $region57: #{lsce_gd_loss.1} parent=55 // pred_check
        %p554 = pneg %p117
      $region58: #{lsce_gd_loss.1} parent=55 // pred_check_branch
        %556 = sbr.rel (%p554) target = $region60
      $region59: #{lsce_gd_loss.1} parent=55 // pred_region
        %p557 = scmp.lt.s32.totalorder %s31, 1
        %s558 = scalar_select %p557, %s31, 1
        %s559 = smul.addr %s558, 4
        %s560 = smul.addr %s559, 8
        %s561 = scalar_lea.vmem %s3, %s560
      $region60: #{lsce_gd_loss.1} parent=55 // pred_fallthru
        _
      // Predicated region
      $region61: #{lsce_gd_loss.1} parent=55 // pred_check
        %p562 = pneg %p143
      $region62: #{lsce_gd_loss.1} parent=55 // pred_check_branch
        %564 = sbr.rel (%p562) target = $region64
      $region63: #{lsce_gd_loss.1} parent=55 // pred_region
        %p565 = scmp.lt.s32.totalorder %s31, 1
        %s566 = scalar_select %p565, %s31, 1
        %s567 = smul.addr %s566, 4
        %s568 = smul.addr %s567, 8
        %s569 = scalar_lea.vmem %s4, %s568
      $region64: #{lsce_gd_loss.1} parent=55 // pred_fallthru
        _
      // Predicated region
      $region65: #{lsce_gd_loss.1} parent=55 // pred_check
        %p570 = pneg %p169
      $region66: #{lsce_gd_loss.1} parent=55 // pred_check_branch
        %572 = sbr.rel (%p570) target = $region68
      $region67: #{lsce_gd_loss.1} parent=55 // pred_region
        %p573 = scmp.lt.s32.totalorder %s31, 1
        %s574 = scalar_select %p573, %s31, 1
        %s575 = smul.addr %s574, 4
        %s576 = smul.addr %s575, 8
        %s577 = scalar_lea.vmem %s5, %s576
      $region68: #{lsce_gd_loss.1} parent=55 // pred_fallthru
        _
      // Predicated region
      $region69: #{lsce_gd_loss.1} parent=55 // pred_check
        %p578 = pneg %p195
      $region70: #{lsce_gd_loss.1} parent=55 // pred_check_branch
        %580 = sbr.rel (%p578) target = $region72
      $region71: #{lsce_gd_loss.1} parent=55 // pred_region
        %p581 = scmp.lt.s32.totalorder %s31, 1
        %s582 = scalar_select %p581, %s31, 1
        %s583 = smul.addr %s582, 8
        %s584 = scalar_lea.vmem %s6, %s583
      $region72: #{lsce_gd_loss.1} parent=55 // pred_fallthru
        _
      // Predicated region
      $region73: #{lsce_gd_loss.1} parent=55 // pred_check
        %p585 = pneg %p221
      $region74: #{lsce_gd_loss.1} parent=55 // pred_check_branch
        %587 = sbr.rel (%p585) target = $region76
      $region75: #{lsce_gd_loss.1} parent=55 // pred_region
        %p588 = scmp.lt.s32.totalorder %s31, 1
        %s589 = scalar_select %p588, %s31, 1
        %s590 = smul.addr %s589, 8
        %s591 = scalar_lea.vmem %s7, %s590
      $region76: #{lsce_gd_loss.1} parent=55 // pred_fallthru
        _
    $region56: #{lsce_gd_loss.1} parent=5 // pred_fallthru
      _
  $region6: #{lsce_gd_loss.1} parent=0 // loop_footer
    %s24 = sadd.s32 1, %s20
  $region7: #{lsce_gd_loss.1} parent=0 // loop_footer_branch
    %19 = sbr.rel target = $region3
  $region8: #{lsce_gd_loss.1} parent=0 // loop_exit
    _

</llo_original>
